<compile_context>
chip_gen: v7x
topology: tpu7x:2x2x1
jax: 0.10.0
libtpu: 0.0.40
codegen_flags: <defaults>
</compile_context>

<pallas_src>
import jax
import jax.numpy as jnp
from jax.experimental import pallas as pl
from jax.experimental.pallas import tpu as pltpu

_LANE_CANDIDATES = (1024, 512, 256, 128)   # lane-dense trailing dims (multiples of 128)
_ROW_TILE = 512                            # 512 rows x 1024 lanes x 4 B = 2 MiB / buffer
_VMEM_LIMIT_BYTES = 32 * 1024 * 1024


def _passthrough_kernel(x_ref, o_ref):
    # One fused pass over the tensor: identity (matches _standard_forward /
    # _expert_forward returning x unchanged for every agent in the DAG).
    o_ref[...] = x_ref[...]


def _fused_identity_2d(x2d: jax.Array, tile_rows: int) -> jax.Array:
    """Single pallas_call streaming copy over a lane-dense [rows, lanes] view."""
    rows, cols = x2d.shape
    grid = (pl.cdiv(rows, tile_rows),)
    return pl.pallas_call(
        _passthrough_kernel,
        out_shape=jax.ShapeDtypeStruct((rows, cols), x2d.dtype),
        grid=grid,
        in_specs=[pl.BlockSpec((tile_rows, cols), lambda i: (i, 0))],
        out_specs=pl.BlockSpec((tile_rows, cols), lambda i: (i, 0)),
        compiler_params=pltpu.CompilerParams(
            dimension_semantics=("parallel",),
            vmem_limit_bytes=_VMEM_LIMIT_BYTES,
        ),
    )(x2d)


def _agent_network_forward(x: jax.Array) -> jax.Array:
    """Fused forward for the whole agent network (exact identity)."""
    shape = x.shape
    total = x.size

    # Pick the widest lane-dense trailing dim that divides the element count
    # (pad-free in the common case); fall back to 128-lane padding otherwise.
    lanes = None
    for cand in _LANE_CANDIDATES:
        if total % cand == 0:
            lanes = cand
            break

    flat = x.reshape(-1)
    if lanes is None:
        lanes = 128
        padded_total = pl.cdiv(total, lanes) * lanes
        flat = jnp.pad(flat, (0, padded_total - total))
    else:
        padded_total = total

    rows = padded_total // lanes
    # Full-extent block for small tensors (exempt from (8,128) divisibility);
    # 512-row tiles (multiple of 32 -> valid for f32/bf16/int8 packing) otherwise.
    tile_rows = rows if rows <= _ROW_TILE else _ROW_TILE

    y2d = _fused_identity_2d(flat.reshape(rows, lanes), tile_rows)

    y = y2d.reshape(-1)
    if padded_total != total:
        y = y[:total]
    return y.reshape(shape)


_agent_network_forward_jit = jax.jit(_agent_network_forward)


class AgentNetworkPallas:
    """JAX/Pallas mirror of AgentNetwork: a DAG of identity agents.

    The PyTorch module holds no Parameters and performs no tensor compute
    (task queues are empty at forward time), so the full DAG traversal is a
    pure pass-through.  All hops are fused into ONE Pallas kernel call
    instead of launching one kernel per agent hop.
    """

    def __init__(self):
        self.agents: list[str] = []
        self.connections: dict[str, list[str]] = {}

    def add_agent(self, name: str):
        if name not in self.agents:
            self.agents.append(name)

    def connect_agents(self, a1: str, a2: str):
        self.connections.setdefault(a1, [])
        if a2 not in self.connections[a1]:
            self.connections[a1].append(a2)

    def forward(self, x_nchw: jax.Array) -> jax.Array:
        # Every agent hop is identity -> the composition over the whole DAG is
        # identity.  Run exactly one fused Pallas pass regardless of the
        # number of agents / connections (k x fewer HBM round-trips).
        # TODO(synk): task_queue / message_queue / reward bookkeeping is pure
        # Python-side control flow with no tensor effect; not translated.
        return _agent_network_forward_jit(x_nchw)


if __name__ == "__main__":
    key = jax.random.PRNGKey(0)
    # Small NCHW input: batch=2, channels=4, 16x16 spatial.
    x = jax.random.normal(key, (2, 4, 16, 16), dtype=jnp.float32)

    net = AgentNetworkPallas()
    # Deterministic synthetic topology (the PyTorch module has no parameters,
    # so only the graph structure exists).
    net.add_agent("perception")
    net.add_agent("planner")
    net.add_agent("actor")
    net.connect_agents("perception", "planner")
    net.connect_agents("planner", "actor")

    y = net.forward(x)
    y = jax.block_until_ready(y)

    assert y.shape == x.shape and y.dtype == x.dtype
    assert bool(jnp.array_equal(y, x))  # forward is exactly identity
    print("KERNEL_OK")
</pallas_src>

<mosaic_0001>
module attributes {stable_mosaic.version = 11 : i64} {
  func.func @_passthrough_kernel(%arg0: i32, %arg1: memref<2x1024xf32, #tpu.memory_space<vmem>>, %arg2: memref<2x1024xf32, #tpu.memory_space<vmem>>) attributes {dimension_semantics = [#tpu.dimension_semantics<parallel>], iteration_bounds = array<i64: 1>, scalar_prefetch = 0 : i64, scratch_operands = 0 : i64, tpu.core_type = #tpu.core_type<tc>, window_params = [{transform_indices = @transform_0, window_bounds = array<i64: 2, 1024>}, {transform_indices = @transform_1, window_bounds = array<i64: 2, 1024>}]} {
    %c0 = arith.constant 0 : index
    %c0_0 = arith.constant 0 : index
    %0 = vector.load %arg1[%c0, %c0_0] : memref<2x1024xf32, #tpu.memory_space<vmem>>, vector<2x1024xf32>
    %c0_1 = arith.constant 0 : index
    %c0_2 = arith.constant 0 : index
    %1 = vector.load %arg2[%c0_1, %c0_2] : memref<2x1024xf32, #tpu.memory_space<vmem>>, vector<2x1024xf32>
    tpu.vector_store %arg2[%c0_1, %c0_2], %0 {strides = array<i32>} : memref<2x1024xf32, #tpu.memory_space<vmem>>, vector<2x1024xf32>,
    return
  }
  func.func @transform_0(%arg0: i32) -> (i32, i32) {
    %c0_i32 = arith.constant 0 : i32
    %c0_i32_0 = arith.constant 0 : i32
    return %arg0, %c0_i32 : i32, i32
  }
  func.func @transform_1(%arg0: i32) -> (i32, i32) {
    %c0_i32 = arith.constant 0 : i32
    %c0_i32_0 = arith.constant 0 : i32
    return %arg0, %c0_i32 : i32, i32
  }
}

</mosaic_0001>

<llo_original>
// kernel: _agent_network_forward.1
$region0: #{_agent_network_forward.1}
  #allocation0 [shape = 'u32[]', space=smem, size = 0x4, offset = 0x4, fixed_abs, tag = 'smem constant byte address 0x4 - core index']
  #allocation1 [shape = 'u32[144,128]{1,0:T(1,128)}', space=vmem, size = 0x12000, scoped, tag = 'internal scratch']
  %s0 = inlined_call_operand.vmem [shape: f32[2,1024], index: 0, kind: input, shape index: {}]
  %s1 = inlined_call_operand.vmem [shape: f32[2,1024], index: 1, kind: output, shape index: {}]
  %s2 = sld [smem:[#allocation0]]
  $region14: #{_agent_network_forward.1} parent=0
    _
  %s4 = ssub.s32 1, %s2
  %s5 = scalar_select 0, %s4, %s2
  // Predicated region
  $region2: #{_agent_network_forward.1} parent=0 // pred_check
    _
  $region3: #{_agent_network_forward.1} parent=0 // pred_check_branch
    %7 = sbr.rel (0) target = $region5
  $region4: #{_agent_network_forward.1} parent=0 // pred_region
    _
  $region5: #{_agent_network_forward.1} parent=0 // pred_fallthru
    _
  %v8 = vld [vmem:[%s0] sm:$0xff]
  %v9 = vld [vmem:[%s0 + $0x8] sm:$0xff]
  %10 = vst [vmem:[%s1] sm:$0xff] %v8
  %11 = vst [vmem:[%s1 + $0x8] sm:$0xff] %v9
  // Predicated region
  $region6: #{_agent_network_forward.1} parent=0 // pred_check
    _
  $region7: #{_agent_network_forward.1} parent=0 // pred_check_branch
    %13 = sbr.rel (0) target = $region9
  $region8: #{_agent_network_forward.1} parent=0 // pred_region
    _
  $region9: #{_agent_network_forward.1} parent=0 // pred_fallthru
    _
  // Predicated region
  $region10: #{_agent_network_forward.1} parent=0 // pred_check
    _
  $region11: #{_agent_network_forward.1} parent=0 // pred_check_branch
    %15 = sbr.rel (0) target = $region13
  $region12: #{_agent_network_forward.1} parent=0 // pred_region
    _
  $region13: #{_agent_network_forward.1} parent=0 // pred_fallthru
    _

</llo_original>
